<compile_context>
chip_gen: v6e
topology: v6e:2x2x1
jax: 0.10.0
libtpu: 0.0.40
codegen_flags: <defaults>
</compile_context>

<pallas_src>
import math
from functools import partial

import jax
import jax.numpy as jnp
from jax.experimental import pallas as pl
from jax.experimental.pallas import tpu as pltpu


try:  # generation-aware scoped-VMEM limit (v7x only has 64 MiB physical VMEM)
    _VMEM_CAP = int(pltpu.get_tpu_info().vmem_capacity_bytes)
except Exception:  # conservative fallback
    _VMEM_CAP = 128 * 1024 * 1024
_VMEM_LIMIT = int(min(64 * 1024 * 1024, (_VMEM_CAP * 3) // 4))


# ---------------------------------------------------------------------------
# Kernel 1: conv1 = Conv2d(1, odim, 3, stride=2) + ReLU  (9 VPU MACs, no MXU)
# ---------------------------------------------------------------------------
def _conv1_kernel(xp_ref, w1_ref, b1_ref, o_ref):
    # xp_ref : (1, tT1, 3G, 9)    bf16   -- 9 shifted input taps in the last dim
    # w1_ref : (9, odim) f32,  b1_ref : (1, odim) f32
    # o_ref  : (1, tT1, 3G, odim) bf16   -- phase-split conv1 output
    xp = xp_ref[...].astype(jnp.float32)
    acc = None
    for k in range(9):                      # unrolled: 9 shifted multiply-adds
        term = xp[..., k:k + 1] * w1_ref[k:k + 1, :]
        acc = term if acc is None else acc + term
    h = jnp.maximum(acc + b1_ref[...], 0.0)
    o_ref[...] = h.astype(o_ref.dtype)


def conv1_pallas(xp, w1k, b1, odim, t1_tile):
    B, T1pad, C3G, _ = xp.shape
    grid = (B, T1pad // t1_tile)
    return pl.pallas_call(
        _conv1_kernel,
        out_shape=jax.ShapeDtypeStruct((B, T1pad, C3G, odim), jnp.bfloat16),
        grid=grid,
        in_specs=[
            pl.BlockSpec((1, t1_tile, C3G, 9), lambda b, t: (b, t, 0, 0)),
            pl.BlockSpec((9, odim), lambda b, t: (0, 0)),
            pl.BlockSpec((1, odim), lambda b, t: (0, 0)),
        ],
        out_specs=pl.BlockSpec((1, t1_tile, C3G, odim),
                               lambda b, t: (b, t, 0, 0)),
        compiler_params=pltpu.CompilerParams(
            dimension_semantics=("parallel", "parallel"),
            vmem_limit_bytes=_VMEM_LIMIT),
    )(xp, w1k, b1)


# ---------------------------------------------------------------------------
# Kernel 2: conv2 (5x5 stride 3) + ReLU + Linear + PositionalEncoding, fused.
# ---------------------------------------------------------------------------
def _conv2_linear_kernel(h1_ref, halo_ref, w2_ref, b2_ref, wl_ref, bl_ref,
                         pe_ref, o_ref, *, tile, F2, G, scale):
    C3G = h1_ref.shape[-2]
    odim = h1_ref.shape[-1]
    # receptive-field rows: main block (3*tile) + 2-row halo + 2 dummy rows so
    # the stride-3 reshape trick below never slices out of range.
    pad2 = jnp.zeros((2, C3G, odim), dtype=h1_ref.dtype)
    rows = jnp.concatenate([h1_ref[0], halo_ref[0], pad2], axis=0)

    # stride-3 time selection for the 5 T-taps via free leading-dim reshapes
    taps = []
    for i in range(5):
        ri = rows[i:i + 3 * tile].reshape(tile, 3, C3G, odim)[:, 0]
        taps.append(ri)                                   # (tile, 3G, odim)

    w2 = w2_ref[...]                                      # (25*odim, odim) bf16
    b2 = b2_ref[...]                                      # (1, odim) f32
    bl = bl_ref[...]                                      # (1, odim) f32
    pe = pe_ref[...]                                      # (tile, odim) f32

    ylin = jnp.zeros((tile, odim), jnp.float32)
    for f2 in range(F2):
        # build the (tile, 25*odim) im2col patch row in VMEM (never in HBM)
        pieces = []
        for i in range(5):
            for j in range(5):
                c = (j % 3) * G + f2 + (j // 3)           # phase-split column
                pieces.append(taps[i][:, c, :])           # (tile, odim)
        patch = jnp.concatenate(pieces, axis=-1)          # (tile, 25*odim)
        acc = jnp.dot(patch, w2, preferred_element_type=jnp.float32)
        h2 = jnp.maximum(acc + b2, 0.0).astype(patch.dtype)
        ylin = ylin + jnp.dot(h2, wl_ref[f2],
                              preferred_element_type=jnp.float32)

    y = (ylin + bl) * scale + pe
    o_ref[0] = y.astype(o_ref.dtype)


def conv2_linear_pallas(h1p, W2, b2, Wl, bl, pe, *, tile, F2, G, scale):
    B, T1pad, C3G, odim = h1p.shape
    T2pad = pe.shape[0]
    grid = (B, T2pad // tile)
    kern = partial(_conv2_linear_kernel, tile=tile, F2=F2, G=G, scale=scale)
    return pl.pallas_call(
        kern,
        out_shape=jax.ShapeDtypeStruct((B, T2pad, odim), jnp.float32),
        grid=grid,
        in_specs=[
            pl.BlockSpec((1, 3 * tile, C3G, odim), lambda b, t: (b, t, 0, 0)),
            # 2-row halo: next two h1 rows after the main block (3*tile even)
            pl.BlockSpec((1, 2, C3G, odim),
                         lambda b, t: (b, (3 * tile * (t + 1)) // 2, 0, 0)),
            pl.BlockSpec((25 * odim, odim), lambda b, t: (0, 0)),
            pl.BlockSpec((1, odim), lambda b, t: (0, 0)),
            pl.BlockSpec((F2, odim, odim), lambda b, t: (0, 0, 0)),
            pl.BlockSpec((1, odim), lambda b, t: (0, 0)),
            # PE depends only on the time tile -> stays resident across batch
            pl.BlockSpec((tile, odim), lambda b, t: (t, 0)),
        ],
        out_specs=pl.BlockSpec((1, tile, odim), lambda b, t: (b, t, 0)),
        compiler_params=pltpu.CompilerParams(
            dimension_semantics=("parallel", "parallel"),
            vmem_limit_bytes=_VMEM_LIMIT),
    )(h1p, h1p, W2, b2, Wl, bl, pe)


# ---------------------------------------------------------------------------
# Glue: parameter prep, small x tap-gather, positional encoding, forward.
# ---------------------------------------------------------------------------
def positional_encoding(length, d_model):
    pos = jnp.arange(length, dtype=jnp.float32)[:, None]
    div = jnp.exp(jnp.arange(0, d_model, 2, dtype=jnp.float32)
                  * (-math.log(10000.0) / d_model))
    pe = jnp.zeros((length, d_model), dtype=jnp.float32)
    pe = pe.at[:, 0::2].set(jnp.sin(pos * div))
    pe = pe.at[:, 1::2].set(jnp.cos(pos * div)[:, : d_model // 2])
    return pe


def conv2d_subsampling6_forward(x, x_mask, params, *,
                                t2_tile_max=16, t1_tile_max=64):
    """x: (B, T, idim) f32; x_mask: (B, 1, T) bool or None."""
    B, T, idim = x.shape
    odim = params["w1"].shape[0]

    T1 = (T - 3) // 2 + 1
    F1 = (idim - 3) // 2 + 1
    T2 = (T1 - 5) // 3 + 1
    F2 = (F1 - 5) // 3 + 1
    assert T2 >= 1 and F2 >= 1, "input too small for Conv2dSubsampling6"
    G = F2 + 1                  # columns per frequency phase
    C3G = 3 * G

    # ---- tile choices (even T2 tile; multiple of 8 when multi-tile) --------
    if T2 <= t2_tile_max:
        t2_tile = T2 + (T2 % 2)            # single tile, even
    else:
        t2_tile = t2_tile_max              # 16: multiple of 8, even
    nT2 = -(-T2 // t2_tile)
    T2pad = nT2 * t2_tile

    T1need = 3 * T2pad + 2                 # rows of h1 read by conv2
    t1_tile = min(t1_tile_max, T1need)
    nT1 = -(-T1need // t1_tile)
    T1pad = nT1 * t1_tile

    # ---- conv1 input: 9 shifted taps of the (small) input, phase-split -----
    Tx_need = 2 * T1pad + 1
    Fx_need = 6 * G + 1
    x_p = jnp.pad(x, ((0, 0), (0, max(0, Tx_need - T)),
                      (0, max(0, Fx_need - idim))))
    t_idx = 2 * jnp.arange(T1pad)[:, None] + (jnp.arange(9) // 3)[None, :]
    cols = jnp.arange(C3G)
    f_base = 6 * (cols % G) + 2 * (cols // G)
    f_idx = f_base[:, None] + (jnp.arange(9) % 3)[None, :]
    xp = x_p[:, t_idx[:, None, :], f_idx[None, :, :]].astype(jnp.bfloat16)

    # ---- conv1 kernel -------------------------------------------------------
    w1k = params["w1"].reshape(odim, 9).T.astype(jnp.float32)      # (9, odim)
    b1r = params["b1"].reshape(1, odim).astype(jnp.float32)
    h1p = conv1_pallas(xp, w1k, b1r, odim, t1_tile)   # (B, T1pad, 3G, odim) bf16

    # ---- fused conv2 + Linear + PositionalEncoding kernel -------------------
    W2 = params["w2"].transpose(2, 3, 1, 0).reshape(25 * odim, odim)
    W2 = W2.astype(jnp.bfloat16)                                    # (25*odim, odim)
    b2r = params["b2"].reshape(1, odim).astype(jnp.float32)
    # fold PyTorch's channel-major flatten into the Linear weight (no transpose
    # of activations): Wl[f2, co, d] = w_lin[d, co*F2 + f2]
    Wl = params["w_lin"].reshape(odim, odim, F2).transpose(2, 1, 0)
    Wl = Wl.astype(jnp.bfloat16)
    blr = params["b_lin"].reshape(1, odim).astype(jnp.float32)
    pe = positional_encoding(T2pad, odim)
    scale = math.sqrt(odim)

    y = conv2_linear_pallas(h1p, W2, b2r, Wl, blr, pe,
                            tile=t2_tile, F2=F2, G=G, scale=scale)
    y = y[:, :T2, :]

    if x_mask is None:
        return y, None
    return y, x_mask[:, :, :-2:2][:, :, :-4:3]


# ---------------------------------------------------------------------------
# Pure-JAX reference (independent of the kernel path) for a numeric check.
# ---------------------------------------------------------------------------
def _reference_forward(x, params):
    odim = params["w1"].shape[0]
    z = x[:, None, :, :]
    z = jax.lax.conv_general_dilated(z, params["w1"], (2, 2), "VALID",
                                     dimension_numbers=("NCHW", "OIHW", "NCHW"))
    z = jax.nn.relu(z + params["b1"][None, :, None, None])
    z = jax.lax.conv_general_dilated(z, params["w2"], (3, 3), "VALID",
                                     dimension_numbers=("NCHW", "OIHW", "NCHW"))
    z = jax.nn.relu(z + params["b2"][None, :, None, None])
    B, C, T2, F2 = z.shape
    z = z.transpose(0, 2, 1, 3).reshape(B, T2, C * F2)
    z = z @ params["w_lin"].T + params["b_lin"]
    return z * math.sqrt(odim) + positional_encoding(T2, odim)[None]


# ---------------------------------------------------------------------------
if __name__ == "__main__":
    B, T, idim, odim = 2, 32, 16, 32
    lin_in = odim * (((idim - 1) // 2 - 2) // 3)

    key = jax.random.PRNGKey(0)
    k = jax.random.split(key, 8)
    params = {
        "w1": jax.random.normal(k[0], (odim, 1, 3, 3), jnp.float32) * 0.1,
        "b1": jax.random.normal(k[1], (odim,), jnp.float32) * 0.1,
        "w2": jax.random.normal(k[2], (odim, odim, 5, 5), jnp.float32) * 0.05,
        "b2": jax.random.normal(k[3], (odim,), jnp.float32) * 0.05,
        "w_lin": jax.random.normal(k[4], (odim, lin_in), jnp.float32) * 0.1,
        "b_lin": jax.random.normal(k[5], (odim,), jnp.float32) * 0.1,
    }
    x = jax.random.normal(k[6], (B, T, idim), jnp.float32)
    x_mask = jnp.ones((B, 1, T), dtype=bool)

    y, mask = conv2d_subsampling6_forward(x, x_mask, params)
    y = jax.block_until_ready(y)
    mask = jax.block_until_ready(mask)

    T1 = (T - 3) // 2 + 1
    T2 = (T1 - 5) // 3 + 1
    assert y.shape == (B, T2, odim), y.shape
    assert mask.shape == (B, 1, T2), mask.shape

    # numeric sanity check against a pure-JAX reference (bf16 path -> loose tol)
    y_ref = jax.block_until_ready(_reference_forward(x, params))
    err = float(jnp.max(jnp.abs(y - y_ref)))
    ref = float(jnp.max(jnp.abs(y_ref))) + 1e-6
    assert err <= 0.06 * ref + 1e-3, (err, ref)

    print("KERNEL_OK")
</pallas_src>

<mosaic_0001>
module attributes {stable_mosaic.version = 11 : i64} {
  func.func @_conv1_kernel(%arg0: i32, %arg1: i32, %arg2: memref<1x14x6x9xbf16, #tpu.memory_space<vmem>>, %arg3: memref<9x32xf32, #tpu.memory_space<vmem>>, %arg4: memref<1x32xf32, #tpu.memory_space<vmem>>, %arg5: memref<1x14x6x32xbf16, #tpu.memory_space<vmem>>) attributes {dimension_semantics = [#tpu.dimension_semantics<parallel>, #tpu.dimension_semantics<parallel>], iteration_bounds = array<i64: 2, 1>, scalar_prefetch = 0 : i64, scratch_operands = 0 : i64, tpu.core_type = #tpu.core_type<tc>, window_params = [{transform_indices = @transform_0, window_bounds = array<i64: 1, 14, 6, 9>}, {pipeline_mode = #tpu.pipeline_mode<synchronous>, transform_indices = @transform_1, window_bounds = array<i64: 9, 32>}, {pipeline_mode = #tpu.pipeline_mode<synchronous>, transform_indices = @transform_2, window_bounds = array<i64: 1, 32>}, {transform_indices = @transform_3, window_bounds = array<i64: 1, 14, 6, 32>}]} {
    %c0 = arith.constant 0 : index
    %c0_0 = arith.constant 0 : index
    %c0_1 = arith.constant 0 : index
    %c0_2 = arith.constant 0 : index
    %0 = vector.load %arg2[%c0, %c0_0, %c0_1, %c0_2] : memref<1x14x6x9xbf16, #tpu.memory_space<vmem>>, vector<1x14x6x9xbf16>
    %1 = arith.extf %0 : vector<1x14x6x9xbf16> to vector<1x14x6x9xf32>
    %2 = vector.extract_strided_slice %1 {offsets = [0, 0, 0, 0], sizes = [1, 14, 6, 1], strides = [1, 1, 1, 1]} : vector<1x14x6x9xf32> to vector<1x14x6x1xf32>
    %c0_3 = arith.constant 0 : index
    %c0_4 = arith.constant 0 : index
    %3 = vector.load %arg3[%c0_3, %c0_4] : memref<9x32xf32, #tpu.memory_space<vmem>>, vector<1x32xf32>
    %4 = vector.shape_cast %3 : vector<1x32xf32> to vector<1x1x1x32xf32>
    %5 = vector.broadcast %2 : vector<1x14x6x1xf32> to vector<1x14x6x32xf32>
    %6 = vector.broadcast %4 : vector<1x1x1x32xf32> to vector<1x14x6x32xf32>
    %7 = arith.mulf %5, %6 : vector<1x14x6x32xf32>
    %8 = vector.extract_strided_slice %1 {offsets = [0, 0, 0, 1], sizes = [1, 14, 6, 1], strides = [1, 1, 1, 1]} : vector<1x14x6x9xf32> to vector<1x14x6x1xf32>
    %c1 = arith.constant 1 : index
    %c0_5 = arith.constant 0 : index
    %9 = vector.load %arg3[%c1, %c0_5] : memref<9x32xf32, #tpu.memory_space<vmem>>, vector<1x32xf32>
    %10 = vector.shape_cast %9 : vector<1x32xf32> to vector<1x1x1x32xf32>
    %11 = vector.broadcast %8 : vector<1x14x6x1xf32> to vector<1x14x6x32xf32>
    %12 = vector.broadcast %10 : vector<1x1x1x32xf32> to vector<1x14x6x32xf32>
    %13 = arith.mulf %11, %12 : vector<1x14x6x32xf32>
    %14 = arith.addf %7, %13 : vector<1x14x6x32xf32>
    %15 = vector.extract_strided_slice %1 {offsets = [0, 0, 0, 2], sizes = [1, 14, 6, 1], strides = [1, 1, 1, 1]} : vector<1x14x6x9xf32> to vector<1x14x6x1xf32>
    %c2 = arith.constant 2 : index
    %c0_6 = arith.constant 0 : index
    %16 = vector.load %arg3[%c2, %c0_6] : memref<9x32xf32, #tpu.memory_space<vmem>>, vector<1x32xf32>
    %17 = vector.shape_cast %16 : vector<1x32xf32> to vector<1x1x1x32xf32>
    %18 = vector.broadcast %15 : vector<1x14x6x1xf32> to vector<1x14x6x32xf32>
    %19 = vector.broadcast %17 : vector<1x1x1x32xf32> to vector<1x14x6x32xf32>
    %20 = arith.mulf %18, %19 : vector<1x14x6x32xf32>
    %21 = arith.addf %14, %20 : vector<1x14x6x32xf32>
    %22 = vector.extract_strided_slice %1 {offsets = [0, 0, 0, 3], sizes = [1, 14, 6, 1], strides = [1, 1, 1, 1]} : vector<1x14x6x9xf32> to vector<1x14x6x1xf32>
    %c3 = arith.constant 3 : index
    %c0_7 = arith.constant 0 : index
    %23 = vector.load %arg3[%c3, %c0_7] : memref<9x32xf32, #tpu.memory_space<vmem>>, vector<1x32xf32>
    %24 = vector.shape_cast %23 : vector<1x32xf32> to vector<1x1x1x32xf32>
    %25 = vector.broadcast %22 : vector<1x14x6x1xf32> to vector<1x14x6x32xf32>
    %26 = vector.broadcast %24 : vector<1x1x1x32xf32> to vector<1x14x6x32xf32>
    %27 = arith.mulf %25, %26 : vector<1x14x6x32xf32>
    %28 = arith.addf %21, %27 : vector<1x14x6x32xf32>
    %29 = vector.extract_strided_slice %1 {offsets = [0, 0, 0, 4], sizes = [1, 14, 6, 1], strides = [1, 1, 1, 1]} : vector<1x14x6x9xf32> to vector<1x14x6x1xf32>
    %c4 = arith.constant 4 : index
    %c0_8 = arith.constant 0 : index
    %30 = vector.load %arg3[%c4, %c0_8] : memref<9x32xf32, #tpu.memory_space<vmem>>, vector<1x32xf32>
    %31 = vector.shape_cast %30 : vector<1x32xf32> to vector<1x1x1x32xf32>
    %32 = vector.broadcast %29 : vector<1x14x6x1xf32> to vector<1x14x6x32xf32>
    %33 = vector.broadcast %31 : vector<1x1x1x32xf32> to vector<1x14x6x32xf32>
    %34 = arith.mulf %32, %33 : vector<1x14x6x32xf32>
    %35 = arith.addf %28, %34 : vector<1x14x6x32xf32>
    %36 = vector.extract_strided_slice %1 {offsets = [0, 0, 0, 5], sizes = [1, 14, 6, 1], strides = [1, 1, 1, 1]} : vector<1x14x6x9xf32> to vector<1x14x6x1xf32>
    %c5 = arith.constant 5 : index
    %c0_9 = arith.constant 0 : index
    %37 = vector.load %arg3[%c5, %c0_9] : memref<9x32xf32, #tpu.memory_space<vmem>>, vector<1x32xf32>
    %38 = vector.shape_cast %37 : vector<1x32xf32> to vector<1x1x1x32xf32>
    %39 = vector.broadcast %36 : vector<1x14x6x1xf32> to vector<1x14x6x32xf32>
    %40 = vector.broadcast %38 : vector<1x1x1x32xf32> to vector<1x14x6x32xf32>
    %41 = arith.mulf %39, %40 : vector<1x14x6x32xf32>
    %42 = arith.addf %35, %41 : vector<1x14x6x32xf32>
    %43 = vector.extract_strided_slice %1 {offsets = [0, 0, 0, 6], sizes = [1, 14, 6, 1], strides = [1, 1, 1, 1]} : vector<1x14x6x9xf32> to vector<1x14x6x1xf32>
    %c6 = arith.constant 6 : index
    %c0_10 = arith.constant 0 : index
    %44 = vector.load %arg3[%c6, %c0_10] : memref<9x32xf32, #tpu.memory_space<vmem>>, vector<1x32xf32>
    %45 = vector.shape_cast %44 : vector<1x32xf32> to vector<1x1x1x32xf32>
    %46 = vector.broadcast %43 : vector<1x14x6x1xf32> to vector<1x14x6x32xf32>
    %47 = vector.broadcast %45 : vector<1x1x1x32xf32> to vector<1x14x6x32xf32>
    %48 = arith.mulf %46, %47 : vector<1x14x6x32xf32>
    %49 = arith.addf %42, %48 : vector<1x14x6x32xf32>
    %50 = vector.extract_strided_slice %1 {offsets = [0, 0, 0, 7], sizes = [1, 14, 6, 1], strides = [1, 1, 1, 1]} : vector<1x14x6x9xf32> to vector<1x14x6x1xf32>
    %c7 = arith.constant 7 : index
    %c0_11 = arith.constant 0 : index
    %51 = vector.load %arg3[%c7, %c0_11] : memref<9x32xf32, #tpu.memory_space<vmem>>, vector<1x32xf32>
    %52 = vector.shape_cast %51 : vector<1x32xf32> to vector<1x1x1x32xf32>
    %53 = vector.broadcast %50 : vector<1x14x6x1xf32> to vector<1x14x6x32xf32>
    %54 = vector.broadcast %52 : vector<1x1x1x32xf32> to vector<1x14x6x32xf32>
    %55 = arith.mulf %53, %54 : vector<1x14x6x32xf32>
    %56 = arith.addf %49, %55 : vector<1x14x6x32xf32>
    %57 = vector.extract_strided_slice %1 {offsets = [0, 0, 0, 8], sizes = [1, 14, 6, 1], strides = [1, 1, 1, 1]} : vector<1x14x6x9xf32> to vector<1x14x6x1xf32>
    %c8 = arith.constant 8 : index
    %c0_12 = arith.constant 0 : index
    %58 = vector.load %arg3[%c8, %c0_12] : memref<9x32xf32, #tpu.memory_space<vmem>>, vector<1x32xf32>
    %59 = vector.shape_cast %58 : vector<1x32xf32> to vector<1x1x1x32xf32>
    %60 = vector.broadcast %57 : vector<1x14x6x1xf32> to vector<1x14x6x32xf32>
    %61 = vector.broadcast %59 : vector<1x1x1x32xf32> to vector<1x14x6x32xf32>
    %62 = arith.mulf %60, %61 : vector<1x14x6x32xf32>
    %63 = arith.addf %56, %62 : vector<1x14x6x32xf32>
    %c0_13 = arith.constant 0 : index
    %c0_14 = arith.constant 0 : index
    %64 = vector.load %arg4[%c0_13, %c0_14] : memref<1x32xf32, #tpu.memory_space<vmem>>, vector<1x32xf32>
    %65 = vector.shape_cast %64 : vector<1x32xf32> to vector<1x1x1x32xf32>
    %66 = vector.broadcast %65 : vector<1x1x1x32xf32> to vector<1x14x6x32xf32>
    %67 = arith.addf %63, %66 : vector<1x14x6x32xf32>
    %cst = arith.constant 0.000000e+00 : f32
    %68 = vector.broadcast %cst : f32 to vector<1x14x6x32xf32>
    %69 = arith.maximumf %67, %68 : vector<1x14x6x32xf32>
    %70 = arith.truncf %69 : vector<1x14x6x32xf32> to vector<1x14x6x32xbf16>
    %c0_15 = arith.constant 0 : index
    %c0_16 = arith.constant 0 : index
    %c0_17 = arith.constant 0 : index
    %c0_18 = arith.constant 0 : index
    %71 = vector.load %arg5[%c0_15, %c0_16, %c0_17, %c0_18] : memref<1x14x6x32xbf16, #tpu.memory_space<vmem>>, vector<1x14x6x32xbf16>
    tpu.vector_store %arg5[%c0_15, %c0_16, %c0_17, %c0_18], %70 {strides = array<i32>} : memref<1x14x6x32xbf16, #tpu.memory_space<vmem>>, vector<1x14x6x32xbf16>,
    return
  }
  func.func @transform_0(%arg0: i32, %arg1: i32) -> (i32, i32, i32, i32) {
    %c0_i32 = arith.constant 0 : i32
    %c0_i32_0 = arith.constant 0 : i32
    %c0_i32_1 = arith.constant 0 : i32
    return %arg0, %arg1, %c0_i32, %c0_i32_0 : i32, i32, i32, i32
  }
  func.func @transform_1(%arg0: i32, %arg1: i32) -> (i32, i32) {
    %c0_i32 = arith.constant 0 : i32
    %c0_i32_0 = arith.constant 0 : i32
    %c0_i32_1 = arith.constant 0 : i32
    return %c0_i32, %c0_i32_0 : i32, i32
  }
  func.func @transform_2(%arg0: i32, %arg1: i32) -> (i32, i32) {
    %c0_i32 = arith.constant 0 : i32
    %c0_i32_0 = arith.constant 0 : i32
    %c0_i32_1 = arith.constant 0 : i32
    return %c0_i32, %c0_i32_0 : i32, i32
  }
  func.func @transform_3(%arg0: i32, %arg1: i32) -> (i32, i32, i32, i32) {
    %c0_i32 = arith.constant 0 : i32
    %c0_i32_0 = arith.constant 0 : i32
    %c0_i32_1 = arith.constant 0 : i32
    return %arg0, %arg1, %c0_i32, %c0_i32_0 : i32, i32, i32, i32
  }
}

</mosaic_0001>

<llo_original>
// kernel: tpu_custom_call.1
$region0: #{tpu_custom_call.1}
  #allocation0 [shape = 'u32[]', space=smem, size = 0x4, offset = 0x4, fixed_abs, tag = 'smem constant byte address 0x4 - core index']
  #allocation1 [shape = 'u32[144,128]{1,0:T(1,128)}', space=vmem, size = 0x12000, scoped, tag = 'internal scratch']
  %s0 = inlined_call_operand.vmem [shape: bf16[2,14,6,9], index: 0, kind: input, shape index: {}]
  %s1 = inlined_call_operand.vmem [shape: f32[9,32], index: 1, kind: input, shape index: {}]
  %s2 = inlined_call_operand.vmem [shape: f32[1,32], index: 2, kind: input, shape index: {}]
  %s3 = inlined_call_operand.vmem [shape: bf16[2,14,6,32], index: 3, kind: output, shape index: {}]
  %s4 = sld [smem:[#allocation0]]
  $region45: #{tpu_custom_call.1} parent=0
    _
  %s6 = ssub.s32 1, %s4
  %s7 = scalar_select 0, %s6, %s4
  loop: start=0, step=1, limit=4
  $region2: #{tpu_custom_call.1} parent=0 // loop_pre_header
    _
  $region3: #{tpu_custom_call.1} parent=0 // loop_header
    %s9 = sphi 0, %s13
    %p10 = scmp.ge.s32.totalorder %s9, 4
    %s16 = sphi 0, %s28
    %s17 = sphi 0, %s24
    %s18 = sphi 0, %s16
    %s19 = sphi 0, %s17
    %s20 = sphi 0, %s18
    %s21 = sphi 0, %s19
    %s33 = sphi 0, %s35
    %s36 = sphi 0, %s33
    %s37 = sphi 0, %s36
    %s53 = sphi 0, %s37
    %s57 = sphi 0, %s57
    %s59 = sphi 0, %s57
    %s60 = sphi 0, %s59
    %s74 = sphi 0, %s60
    %s78 = sphi 0, %s78
    %s80 = sphi 0, %s78
    %s81 = sphi 0, %s80
    %s95 = sphi 0, %s81
    %s103 = sphi 0, %s105
    %s106 = sphi 0, %s103
    %s107 = sphi 0, %s106
    %s123 = sphi 0, %s107
  $region4: #{tpu_custom_call.1} parent=0 // loop_header_branch
    %12 = sbr.rel (%p10) target = $region8
  $region5: #{tpu_custom_call.1} parent=0 // loop_body
    %s14 = ssub.s32 %s9, 1
    %s15 = ssub.s32 %s9, 2
    %s22 = sadd.s32 1, %s17
    %p23 = scmp.ge.s32.totalorder %s22, 1
    %s24 = scalar_select %p23, 0, %s22
    %s25 = sadd.s32 1, %s16
    %s26 = scalar_select %p23, %s25, %s16
    %p27 = scmp.ge.s32.totalorder %s26, 2
    %s28 = scalar_select %p27, 0, %s26
    %s29 = ssub.s32 %s16, %s28
    %s30 = ssub.s32 %s17, %s24
    %s31 = sor.u32 %s29, %s30
    %p32 = scmp.eq.s32.totalorder %s31, 0
    %s34 = sadd.s32 %s33, 1
    %s35 = scalar_select %p32, %s33, %s34
    %p38 = pneg %p32
    %p39 = scmp.eq.s32.totalorder %s9, 1
    %p40 = por %p38, %p39
    %p41 = scmp.ne.s32.totalorder %s33, %s36
    %p42 = scmp.eq.s32.totalorder %s9, 0
    %p43 = por %p41, %p42
    %p44 = scmp.ne.s32.totalorder %s33, %s36
    %p45 = scmp.eq.s32.totalorder %s14, 1
    %p46 = por %p44, %p45
    %p47 = scmp.ne.s32.totalorder %s36, %s37
    %p48 = scmp.eq.s32.totalorder %s14, 0
    %p49 = por %p47, %p48
    %p50 = scmp.ne.s32.totalorder %s36, %s37
    %p51 = scmp.eq.s32.totalorder %s15, 1
    %p52 = por %p50, %p51
    %p54 = scmp.ne.s32.totalorder %s37, %s53
    %p55 = scmp.eq.s32.totalorder %s15, 0
    %p56 = por %p54, %p55
    %s58 = sadd.s32 %s57, 1
    %p61 = scmp.eq.s32.totalorder %s9, 1
    %p62 = scmp.ne.s32.totalorder %s57, %s59
    %p63 = scmp.eq.s32.totalorder %s9, 0
    %p64 = por %p62, %p63
    %p65 = scmp.ne.s32.totalorder %s57, %s59
    %p66 = scmp.eq.s32.totalorder %s14, 1
    %p67 = por %p65, %p66
    %p68 = scmp.ne.s32.totalorder %s59, %s60
    %p69 = scmp.eq.s32.totalorder %s14, 0
    %p70 = por %p68, %p69
    %p71 = scmp.ne.s32.totalorder %s59, %s60
    %p72 = scmp.eq.s32.totalorder %s15, 1
    %p73 = por %p71, %p72
    %p75 = scmp.ne.s32.totalorder %s60, %s74
    %p76 = scmp.eq.s32.totalorder %s15, 0
    %p77 = por %p75, %p76
    %s79 = sadd.s32 %s78, 1
    %p82 = scmp.eq.s32.totalorder %s9, 1
    %p83 = scmp.ne.s32.totalorder %s78, %s80
    %p84 = scmp.eq.s32.totalorder %s9, 0
    %p85 = por %p83, %p84
    %p86 = scmp.ne.s32.totalorder %s78, %s80
    %p87 = scmp.eq.s32.totalorder %s14, 1
    %p88 = por %p86, %p87
    %p89 = scmp.ne.s32.totalorder %s80, %s81
    %p90 = scmp.eq.s32.totalorder %s14, 0
    %p91 = por %p89, %p90
    %p92 = scmp.ne.s32.totalorder %s80, %s81
    %p93 = scmp.eq.s32.totalorder %s15, 1
    %p94 = por %p92, %p93
    %p96 = scmp.ne.s32.totalorder %s81, %s95
    %p97 = scmp.eq.s32.totalorder %s15, 0
    %p98 = por %p96, %p97
    %s99 = ssub.s32 %s16, %s28
    %s100 = ssub.s32 %s17, %s24
    %s101 = sor.u32 %s99, %s100
    %p102 = scmp.eq.s32.totalorder %s101, 0
    %s104 = sadd.s32 %s103, 1
    %s105 = scalar_select %p102, %s103, %s104
    %p108 = pneg %p102
    %p109 = scmp.eq.s32.totalorder %s9, 1
    %p110 = por %p108, %p109
    %p111 = scmp.ne.s32.totalorder %s103, %s106
    %p112 = scmp.eq.s32.totalorder %s9, 0
    %p113 = por %p111, %p112
    %p114 = scmp.ne.s32.totalorder %s103, %s106
    %p115 = scmp.eq.s32.totalorder %s14, 1
    %p116 = por %p114, %p115
    %p117 = scmp.ne.s32.totalorder %s106, %s107
    %p118 = scmp.eq.s32.totalorder %s14, 0
    %p119 = por %p117, %p118
    %p120 = scmp.ne.s32.totalorder %s106, %s107
    %p121 = scmp.eq.s32.totalorder %s15, 1
    %p122 = por %p120, %p121
    %p124 = scmp.ne.s32.totalorder %s107, %s123
    %p125 = scmp.eq.s32.totalorder %s15, 0
    %p126 = por %p124, %p125
    %p127 = scmp.le.s32.totalorder 1, %s9
    %p128 = scmp.lt.s32.totalorder %s9, 3
    %p129 = pnand %p127, %p128
    %p130 = pneg %p129
    // Predicated region
    $region9: #{tpu_custom_call.1} parent=5 // pred_check
      _
    $region10: #{tpu_custom_call.1} parent=5 // pred_check_branch
      %132 = sbr.rel (%p129) target = $region12
    $region11: #{tpu_custom_call.1} parent=5 // pred_region
      %s133 = ssub.s32 %s9, 1
      // Predicated region
      $region13: #{tpu_custom_call.1} parent=11 // pred_check
        %p134 = pneg %p70
      $region14: #{tpu_custom_call.1} parent=11 // pred_check_branch
        %136 = sbr.rel (%p134) target = $region16
      $region15: #{tpu_custom_call.1} parent=11 // pred_region
        _
      $region16: #{tpu_custom_call.1} parent=11 // pred_fallthru
        _
      // Predicated region
      $region17: #{tpu_custom_call.1} parent=11 // pred_check
        %p137 = pneg %p91
      $region18: #{tpu_custom_call.1} parent=11 // pred_check_branch
        %139 = sbr.rel (%p137) target = $region20
      $region19: #{tpu_custom_call.1} parent=11 // pred_region
        _
      $region20: #{tpu_custom_call.1} parent=11 // pred_fallthru
        _
    $region12: #{tpu_custom_call.1} parent=5 // pred_fallthru
      _
    %p140 = scmp.lt.s32.totalorder %s9, 2
    // Predicated region
    $region21: #{tpu_custom_call.1} parent=5 // pred_check
      %p141 = pneg %p140
    $region22: #{tpu_custom_call.1} parent=5 // pred_check_branch
      %143 = sbr.rel (%p141) target = $region24
    $region23: #{tpu_custom_call.1} parent=5 // pred_region
      // Predicated region
      $region25: #{tpu_custom_call.1} parent=23 // pred_check
        %p144 = pneg %p43
      $region26: #{tpu_custom_call.1} parent=23 // pred_check_branch
        %146 = sbr.rel (%p144) target = $region28
      $region27: #{tpu_custom_call.1} parent=23 // pred_region
        %s147 = smul.u32 14, %s17
        %p148 = scmp.lt.s32.totalorder %s16, 1
        %s149 = scalar_select %p148, %s16, 1
        %p150 = scmp.lt.s32.totalorder %s147, 13
        %s151 = scalar_select %p150, %s147, 13
        %s152 = smul.addr %s149, 14
        %s153 = sadd.s32 %s151, %s152
        %s154 = smul.addr %s153, 4
        %s155 = scalar_lea.vmem %s0, %s154
        %s156 = smul.u32 14, %s17
      $region28: #{tpu_custom_call.1} parent=23 // pred_fallthru
        _
    $region24: #{tpu_custom_call.1} parent=5 // pred_fallthru
      _
    %p157 = scmp.le.s32.totalorder 1, %s9
    %p158 = scmp.lt.s32.totalorder %s9, 3
    %p159 = pnand %p157, %p158
    %p160 = pneg %p159
    // Predicated region
    $region29: #{tpu_custom_call.1} parent=5 // pred_check
      _
    $region30: #{tpu_custom_call.1} parent=5 // pred_check_branch
      %162 = sbr.rel (%p159) target = $region32
    $region31: #{tpu_custom_call.1} parent=5 // pred_region
      %s163 = ssub.s32 %s9, 1
      %s164 = smul.u32 14, %s19
      %p165 = scmp.lt.s32.totalorder %s18, 1
      %s166 = scalar_select %p165, %s18, 1
      %p167 = scmp.lt.s32.totalorder %s164, 13
      %s168 = scalar_select %p167, %s164, 13
      %s169 = smul.addr %s166, 14
      %s170 = sadd.s32 %s168, %s169
      %s171 = smul.addr %s170, 4
      %s172 = scalar_lea.vmem %s0, %s171
      %p173 = pneg %p49
      %p174 = pneg %p46
      %p175 = pneg %p70
      %p176 = pneg %p67
      %p177 = pneg %p91
      %p178 = pneg %p88
      %p179 = pneg %p119
      %p180 = pneg %p116
      %s181 = smul.u32 14, %s19
      %p182 = scmp.lt.s32.totalorder %s18, 1
      %s183 = scalar_select %p182, %s18, 1
      %p184 = scmp.lt.s32.totalorder %s181, 13
      %s185 = scalar_select %p184, %s181, 13
      %s186 = smul.addr %s183, 14
      %s187 = sadd.s32 %s185, %s186
      %s188 = smul.addr %s187, 4
      %s189 = scalar_lea.vmem %s3, %s188
      %s190 = smul.u32 14, %s19
      %p191 = scmp.lt.s32.totalorder %s18, 1
      %s192 = scalar_select %p191, %s18, 1
      %p193 = scmp.lt.s32.totalorder %s190, 13
      %s194 = scalar_select %p193, %s190, 13
      %s195 = smul.addr %s192, 14
      %s196 = sadd.s32 %s194, %s195
      %s197 = smul.addr %s196, 4
      %s198 = scalar_lea.vmem %s0, %s197
      %s199 = smul.u32 14, %s19
      %s200 = smul.u32 14, %s19
      %p201 = scmp.lt.s32.totalorder %s18, 1
      %s202 = scalar_select %p201, %s18, 1
      %p203 = scmp.lt.s32.totalorder %s200, 13
      %s204 = scalar_select %p203, %s200, 13
      %s205 = smul.addr %s202, 14
      %s206 = sadd.s32 %s204, %s205
      %s207 = smul.addr %s206, 4
      %s208 = scalar_lea.vmem %s3, %s207
      %s209 = smul.u32 14, %s19
      %v210 = vld [vmem:[%s198] sm:$0x7]
      %v211 = vld [vmem:[%s198 + $0x4] sm:$0x7]
      %v212 = vld [vmem:[%s198 + $0x8] sm:$0x7]
      %v213 = vld [vmem:[%s198 + $0xc] sm:$0x7]
      %v214 = vld [vmem:[%s198 + $0x10] sm:$0x7]
      %v215 = vld [vmem:[%s198 + $0x14] sm:$0x7]
      %v216 = vld [vmem:[%s198 + $0x18] sm:$0x7]
      %v217 = vld [vmem:[%s198 + $0x1c] sm:$0x7]
      %v218 = vld [vmem:[%s198 + $0x20] sm:$0x7]
      %v219 = vld [vmem:[%s198 + $0x24] sm:$0x7]
      %v220 = vld [vmem:[%s198 + $0x28] sm:$0x7]
      %v221 = vld [vmem:[%s198 + $0x2c] sm:$0x7]
      %v222 = vld [vmem:[%s198 + $0x30] sm:$0x7]
      %v223 = vld [vmem:[%s198 + $0x34] sm:$0x7]
      %v224 = vunpack.c.l.bf16 %v210
      %v225 = vunpack.c.l.bf16 %v211
      %v226 = vunpack.c.l.bf16 %v212
      %v227 = vunpack.c.l.bf16 %v213
      %v228 = vunpack.c.l.bf16 %v214
      %v229 = vunpack.c.l.bf16 %v215
      %v230 = vunpack.c.l.bf16 %v216
      %v231 = vunpack.c.l.bf16 %v217
      %v232 = vunpack.c.l.bf16 %v218
      %v233 = vunpack.c.l.bf16 %v219
      %v234 = vunpack.c.l.bf16 %v220
      %v235 = vunpack.c.l.bf16 %v221
      %v236 = vunpack.c.l.bf16 %v222
      %v237 = vunpack.c.l.bf16 %v223
      %v238 = vld [vmem:[%s1] sm:$0x1]
      %240 = vset.pattern.permute.xlu0 0
      %241 = vperm.xlu0 %240, %v224
      %v242 = vpop.permute.xlu0 %241
      %245 = vset.pattern.permute.xlu0 0
      %246 = vperm.xlu0 %245, %v225
      %v247 = vpop.permute.xlu0 %246
      %250 = vset.pattern.permute.xlu0 0
      %251 = vperm.xlu0 %250, %v226
      %v252 = vpop.permute.xlu0 %251
      %255 = vset.pattern.permute.xlu0 0
      %256 = vperm.xlu0 %255, %v227
      %v257 = vpop.permute.xlu0 %256
      %260 = vset.pattern.permute.xlu0 0
      %261 = vperm.xlu0 %260, %v228
      %v262 = vpop.permute.xlu0 %261
      %265 = vset.pattern.permute.xlu0 0
      %266 = vperm.xlu0 %265, %v229
      %v267 = vpop.permute.xlu0 %266
      %270 = vset.pattern.permute.xlu0 0
      %271 = vperm.xlu0 %270, %v230
      %v272 = vpop.permute.xlu0 %271
      %275 = vset.pattern.permute.xlu0 0
      %276 = vperm.xlu0 %275, %v231
      %v277 = vpop.permute.xlu0 %276
      %280 = vset.pattern.permute.xlu0 0
      %281 = vperm.xlu0 %280, %v232
      %v282 = vpop.permute.xlu0 %281
      %285 = vset.pattern.permute.xlu0 0
      %286 = vperm.xlu0 %285, %v233
      %v287 = vpop.permute.xlu0 %286
      %290 = vset.pattern.permute.xlu0 0
      %291 = vperm.xlu0 %290, %v234
      %v292 = vpop.permute.xlu0 %291
      %295 = vset.pattern.permute.xlu0 0
      %296 = vperm.xlu0 %295, %v235
      %v297 = vpop.permute.xlu0 %296
      %300 = vset.pattern.permute.xlu0 0
      %301 = vperm.xlu0 %300, %v236
      %v302 = vpop.permute.xlu0 %301
      %305 = vset.pattern.permute.xlu0 0
      %306 = vperm.xlu0 %305, %v237
      %v307 = vpop.permute.xlu0 %306
      %v309 = vlaneseq
      %v310 = vshrl.u32 %v309, 7
      %v311 = vsub.s32 0, %v310
      %v312 = vrot.slane %v238, %v311
      %v313 = vmul.f32 %v242, %v312
      %v314 = vmul.f32 %v247, %v312
      %v315 = vmul.f32 %v252, %v312
      %v316 = vmul.f32 %v257, %v312
      %v317 = vmul.f32 %v262, %v312
      %v318 = vmul.f32 %v267, %v312
      %v319 = vmul.f32 %v272, %v312
      %v320 = vmul.f32 %v277, %v312
      %v321 = vmul.f32 %v282, %v312
      %v322 = vmul.f32 %v287, %v312
      %v323 = vmul.f32 %v292, %v312
      %v324 = vmul.f32 %v297, %v312
      %v325 = vmul.f32 %v302, %v312
      %v326 = vmul.f32 %v307, %v312
      %v327 = vld [vmem:[%s1 + $0x1] sm:$0x1]
      %328 = vset.pattern.permute.xlu0 1
      %329 = vperm.xlu0 %328, %v224
      %v330 = vpop.permute.xlu0 %329
      %332 = vset.pattern.permute.xlu0 1
      %333 = vperm.xlu0 %332, %v225
      %v334 = vpop.permute.xlu0 %333
      %336 = vset.pattern.permute.xlu0 1
      %337 = vperm.xlu0 %336, %v226
      %v338 = vpop.permute.xlu0 %337
      %340 = vset.pattern.permute.xlu0 1
      %341 = vperm.xlu0 %340, %v227
      %v342 = vpop.permute.xlu0 %341
      %344 = vset.pattern.permute.xlu0 1
      %345 = vperm.xlu0 %344, %v228
      %v346 = vpop.permute.xlu0 %345
      %348 = vset.pattern.permute.xlu0 1
      %349 = vperm.xlu0 %348, %v229
      %v350 = vpop.permute.xlu0 %349
      %352 = vset.pattern.permute.xlu0 1
      %353 = vperm.xlu0 %352, %v230
      %v354 = vpop.permute.xlu0 %353
      %356 = vset.pattern.permute.xlu0 1
      %357 = vperm.xlu0 %356, %v231
      %v358 = vpop.permute.xlu0 %357
      %360 = vset.pattern.permute.xlu0 1
      %361 = vperm.xlu0 %360, %v232
      %v362 = vpop.permute.xlu0 %361
      %364 = vset.pattern.permute.xlu0 1
      %365 = vperm.xlu0 %364, %v233
      %v366 = vpop.permute.xlu0 %365
      %368 = vset.pattern.permute.xlu0 1
      %369 = vperm.xlu0 %368, %v234
      %v370 = vpop.permute.xlu0 %369
      %372 = vset.pattern.permute.xlu0 1
      %373 = vperm.xlu0 %372, %v235
      %v374 = vpop.permute.xlu0 %373
      %376 = vset.pattern.permute.xlu0 1
      %377 = vperm.xlu0 %376, %v236
      %v378 = vpop.permute.xlu0 %377
      %380 = vset.pattern.permute.xlu0 1
      %381 = vperm.xlu0 %380, %v237
      %v382 = vpop.permute.xlu0 %381
      %v384 = vlaneseq
      %v385 = vshrl.u32 %v384, 7
      %v386 = vsub.s32 0, %v385
      %v387 = vrot.slane %v327, %v386
      %v388 = vmul.f32 %v330, %v387
      %v389 = vmul.f32 %v334, %v387
      %v390 = vmul.f32 %v338, %v387
      %v391 = vmul.f32 %v342, %v387
      %v392 = vmul.f32 %v346, %v387
      %v393 = vmul.f32 %v350, %v387
      %v394 = vmul.f32 %v354, %v387
      %v395 = vmul.f32 %v358, %v387
      %v396 = vmul.f32 %v362, %v387
      %v397 = vmul.f32 %v366, %v387
      %v398 = vmul.f32 %v370, %v387
      %v399 = vmul.f32 %v374, %v387
      %v400 = vmul.f32 %v378, %v387
      %v401 = vmul.f32 %v382, %v387
      %v402 = vadd.f32 %v313, %v388
      %v403 = vadd.f32 %v314, %v389
      %v404 = vadd.f32 %v315, %v390
      %v405 = vadd.f32 %v316, %v391
      %v406 = vadd.f32 %v317, %v392
      %v407 = vadd.f32 %v318, %v393
      %v408 = vadd.f32 %v319, %v394
      %v409 = vadd.f32 %v320, %v395
      %v410 = vadd.f32 %v321, %v396
      %v411 = vadd.f32 %v322, %v397
      %v412 = vadd.f32 %v323, %v398
      %v413 = vadd.f32 %v324, %v399
      %v414 = vadd.f32 %v325, %v400
      %v415 = vadd.f32 %v326, %v401
      %v416 = vld [vmem:[%s1 + $0x2] sm:$0x1]
      %417 = vset.pattern.permute.xlu0 2
      %418 = vperm.xlu0 %417, %v224
      %v419 = vpop.permute.xlu0 %418
      %421 = vset.pattern.permute.xlu0 2
      %422 = vperm.xlu0 %421, %v225
      %v423 = vpop.permute.xlu0 %422
      %425 = vset.pattern.permute.xlu0 2
      %426 = vperm.xlu0 %425, %v226
      %v427 = vpop.permute.xlu0 %426
      %429 = vset.pattern.permute.xlu0 2
      %430 = vperm.xlu0 %429, %v227
      %v431 = vpop.permute.xlu0 %430
      %433 = vset.pattern.permute.xlu0 2
      %434 = vperm.xlu0 %433, %v228
      %v435 = vpop.permute.xlu0 %434
      %437 = vset.pattern.permute.xlu0 2
      %438 = vperm.xlu0 %437, %v229
      %v439 = vpop.permute.xlu0 %438
      %441 = vset.pattern.permute.xlu0 2
      %442 = vperm.xlu0 %441, %v230
      %v443 = vpop.permute.xlu0 %442
      %445 = vset.pattern.permute.xlu0 2
      %446 = vperm.xlu0 %445, %v231
      %v447 = vpop.permute.xlu0 %446
      %449 = vset.pattern.permute.xlu0 2
      %450 = vperm.xlu0 %449, %v232
      %v451 = vpop.permute.xlu0 %450
      %453 = vset.pattern.permute.xlu0 2
      %454 = vperm.xlu0 %453, %v233
      %v455 = vpop.permute.xlu0 %454
      %457 = vset.pattern.permute.xlu0 2
      %458 = vperm.xlu0 %457, %v234
      %v459 = vpop.permute.xlu0 %458
      %461 = vset.pattern.permute.xlu0 2
      %462 = vperm.xlu0 %461, %v235
      %v463 = vpop.permute.xlu0 %462
      %465 = vset.pattern.permute.xlu0 2
      %466 = vperm.xlu0 %465, %v236
      %v467 = vpop.permute.xlu0 %466
      %469 = vset.pattern.permute.xlu0 2
      %470 = vperm.xlu0 %469, %v237
      %v471 = vpop.permute.xlu0 %470
      %v473 = vlaneseq
      %v474 = vshrl.u32 %v473, 7
      %v475 = vsub.s32 0, %v474
      %v476 = vrot.slane %v416, %v475
      %v477 = vmul.f32 %v419, %v476
      %v478 = vmul.f32 %v423, %v476
      %v479 = vmul.f32 %v427, %v476
      %v480 = vmul.f32 %v431, %v476
      %v481 = vmul.f32 %v435, %v476
      %v482 = vmul.f32 %v439, %v476
      %v483 = vmul.f32 %v443, %v476
      %v484 = vmul.f32 %v447, %v476
      %v485 = vmul.f32 %v451, %v476
      %v486 = vmul.f32 %v455, %v476
      %v487 = vmul.f32 %v459, %v476
      %v488 = vmul.f32 %v463, %v476
      %v489 = vmul.f32 %v467, %v476
      %v490 = vmul.f32 %v471, %v476
      %v491 = vadd.f32 %v402, %v477
      %v492 = vadd.f32 %v403, %v478
      %v493 = vadd.f32 %v404, %v479
      %v494 = vadd.f32 %v405, %v480
      %v495 = vadd.f32 %v406, %v481
      %v496 = vadd.f32 %v407, %v482
      %v497 = vadd.f32 %v408, %v483
      %v498 = vadd.f32 %v409, %v484
      %v499 = vadd.f32 %v410, %v485
      %v500 = vadd.f32 %v411, %v486
      %v501 = vadd.f32 %v412, %v487
      %v502 = vadd.f32 %v413, %v488
      %v503 = vadd.f32 %v414, %v489
      %v504 = vadd.f32 %v415, %v490
      %v505 = vld [vmem:[%s1 + $0x3] sm:$0x1]
      %506 = vset.pattern.permute.xlu0 3
      %507 = vperm.xlu0 %506, %v224
      %v508 = vpop.permute.xlu0 %507
      %510 = vset.pattern.permute.xlu0 3
      %511 = vperm.xlu0 %510, %v225
      %v512 = vpop.permute.xlu0 %511
      %514 = vset.pattern.permute.xlu0 3
      %515 = vperm.xlu0 %514, %v226
      %v516 = vpop.permute.xlu0 %515
      %518 = vset.pattern.permute.xlu0 3
      %519 = vperm.xlu0 %518, %v227
      %v520 = vpop.permute.xlu0 %519
      %522 = vset.pattern.permute.xlu0 3
      %523 = vperm.xlu0 %522, %v228
      %v524 = vpop.permute.xlu0 %523
      %526 = vset.pattern.permute.xlu0 3
      %527 = vperm.xlu0 %526, %v229
      %v528 = vpop.permute.xlu0 %527
      %530 = vset.pattern.permute.xlu0 3
      %531 = vperm.xlu0 %530, %v230
      %v532 = vpop.permute.xlu0 %531
      %534 = vset.pattern.permute.xlu0 3
      %535 = vperm.xlu0 %534, %v231
      %v536 = vpop.permute.xlu0 %535
      %538 = vset.pattern.permute.xlu0 3
      %539 = vperm.xlu0 %538, %v232
      %v540 = vpop.permute.xlu0 %539
      %542 = vset.pattern.permute.xlu0 3
      %543 = vperm.xlu0 %542, %v233
      %v544 = vpop.permute.xlu0 %543
      %546 = vset.pattern.permute.xlu0 3
      %547 = vperm.xlu0 %546, %v234
      %v548 = vpop.permute.xlu0 %547
      %550 = vset.pattern.permute.xlu0 3
      %551 = vperm.xlu0 %550, %v235
      %v552 = vpop.permute.xlu0 %551
      %554 = vset.pattern.permute.xlu0 3
      %555 = vperm.xlu0 %554, %v236
      %v556 = vpop.permute.xlu0 %555
      %558 = vset.pattern.permute.xlu0 3
      %559 = vperm.xlu0 %558, %v237
      %v560 = vpop.permute.xlu0 %559
      %v562 = vlaneseq
      %v563 = vshrl.u32 %v562, 7
      %v564 = vsub.s32 0, %v563
      %v565 = vrot.slane %v505, %v564
      %v566 = vmul.f32 %v508, %v565
      %v567 = vmul.f32 %v512, %v565
      %v568 = vmul.f32 %v516, %v565
      %v569 = vmul.f32 %v520, %v565
      %v570 = vmul.f32 %v524, %v565
      %v571 = vmul.f32 %v528, %v565
      %v572 = vmul.f32 %v532, %v565
      %v573 = vmul.f32 %v536, %v565
      %v574 = vmul.f32 %v540, %v565
      %v575 = vmul.f32 %v544, %v565
      %v576 = vmul.f32 %v548, %v565
      %v577 = vmul.f32 %v552, %v565
      %v578 = vmul.f32 %v556, %v565
      %v579 = vmul.f32 %v560, %v565
      %v580 = vadd.f32 %v491, %v566
      %v581 = vadd.f32 %v492, %v567
      %v582 = vadd.f32 %v493, %v568
      %v583 = vadd.f32 %v494, %v569
      %v584 = vadd.f32 %v495, %v570
      %v585 = vadd.f32 %v496, %v571
      %v586 = vadd.f32 %v497, %v572
      %v587 = vadd.f32 %v498, %v573
      %v588 = vadd.f32 %v499, %v574
      %v589 = vadd.f32 %v500, %v575
      %v590 = vadd.f32 %v501, %v576
      %v591 = vadd.f32 %v502, %v577
      %v592 = vadd.f32 %v503, %v578
      %v593 = vadd.f32 %v504, %v579
      %v594 = vld [vmem:[%s1 + $0x4] sm:$0x1]
      %595 = vset.pattern.permute.xlu0 4
      %596 = vperm.xlu0 %595, %v224
      %v597 = vpop.permute.xlu0 %596
      %599 = vset.pattern.permute.xlu0 4
      %600 = vperm.xlu0 %599, %v225
      %v601 = vpop.permute.xlu0 %600
      %603 = vset.pattern.permute.xlu0 4
      %604 = vperm.xlu0 %603, %v226
      %v605 = vpop.permute.xlu0 %604
      %607 = vset.pattern.permute.xlu0 4
      %608 = vperm.xlu0 %607, %v227
      %v609 = vpop.permute.xlu0 %608
      %611 = vset.pattern.permute.xlu0 4
      %612 = vperm.xlu0 %611, %v228
      %v613 = vpop.permute.xlu0 %612
      %615 = vset.pattern.permute.xlu0 4
      %616 = vperm.xlu0 %615, %v229
      %v617 = vpop.permute.xlu0 %616
      %619 = vset.pattern.permute.xlu0 4
      %620 = vperm.xlu0 %619, %v230
      %v621 = vpop.permute.xlu0 %620
      %623 = vset.pattern.permute.xlu0 4
      %624 = vperm.xlu0 %623, %v231
      %v625 = vpop.permute.xlu0 %624
      %627 = vset.pattern.permute.xlu0 4
      %628 = vperm.xlu0 %627, %v232
      %v629 = vpop.permute.xlu0 %628
      %631 = vset.pattern.permute.xlu0 4
      %632 = vperm.xlu0 %631, %v233
      %v633 = vpop.permute.xlu0 %632
      %635 = vset.pattern.permute.xlu0 4
      %636 = vperm.xlu0 %635, %v234
      %v637 = vpop.permute.xlu0 %636
      %639 = vset.pattern.permute.xlu0 4
      %640 = vperm.xlu0 %639, %v235
      %v641 = vpop.permute.xlu0 %640
      %643 = vset.pattern.permute.xlu0 4
      %644 = vperm.xlu0 %643, %v236
      %v645 = vpop.permute.xlu0 %644
      %647 = vset.pattern.permute.xlu0 4
      %648 = vperm.xlu0 %647, %v237
      %v649 = vpop.permute.xlu0 %648
      %v651 = vlaneseq
      %v652 = vshrl.u32 %v651, 7
      %v653 = vsub.s32 0, %v652
      %v654 = vrot.slane %v594, %v653
      %v655 = vmul.f32 %v597, %v654
      %v656 = vmul.f32 %v601, %v654
      %v657 = vmul.f32 %v605, %v654
      %v658 = vmul.f32 %v609, %v654
      %v659 = vmul.f32 %v613, %v654
      %v660 = vmul.f32 %v617, %v654
      %v661 = vmul.f32 %v621, %v654
      %v662 = vmul.f32 %v625, %v654
      %v663 = vmul.f32 %v629, %v654
      %v664 = vmul.f32 %v633, %v654
      %v665 = vmul.f32 %v637, %v654
      %v666 = vmul.f32 %v641, %v654
      %v667 = vmul.f32 %v645, %v654
      %v668 = vmul.f32 %v649, %v654
      %v669 = vadd.f32 %v580, %v655
      %v670 = vadd.f32 %v581, %v656
      %v671 = vadd.f32 %v582, %v657
      %v672 = vadd.f32 %v583, %v658
      %v673 = vadd.f32 %v584, %v659
      %v674 = vadd.f32 %v585, %v660
      %v675 = vadd.f32 %v586, %v661
      %v676 = vadd.f32 %v587, %v662
      %v677 = vadd.f32 %v588, %v663
      %v678 = vadd.f32 %v589, %v664
      %v679 = vadd.f32 %v590, %v665
      %v680 = vadd.f32 %v591, %v666
      %v681 = vadd.f32 %v592, %v667
      %v682 = vadd.f32 %v593, %v668
      %v683 = vld [vmem:[%s1 + $0x5] sm:$0x1]
      %684 = vset.pattern.permute.xlu0 5
      %685 = vperm.xlu0 %684, %v224
      %v686 = vpop.permute.xlu0 %685
      %688 = vset.pattern.permute.xlu0 5
      %689 = vperm.xlu0 %688, %v225
      %v690 = vpop.permute.xlu0 %689
      %692 = vset.pattern.permute.xlu0 5
      %693 = vperm.xlu0 %692, %v226
      %v694 = vpop.permute.xlu0 %693
      %696 = vset.pattern.permute.xlu0 5
      %697 = vperm.xlu0 %696, %v227
      %v698 = vpop.permute.xlu0 %697
      %700 = vset.pattern.permute.xlu0 5
      %701 = vperm.xlu0 %700, %v228
      %v702 = vpop.permute.xlu0 %701
      %704 = vset.pattern.permute.xlu0 5
      %705 = vperm.xlu0 %704, %v229
      %v706 = vpop.permute.xlu0 %705
      %708 = vset.pattern.permute.xlu0 5
      %709 = vperm.xlu0 %708, %v230
      %v710 = vpop.permute.xlu0 %709
      %712 = vset.pattern.permute.xlu0 5
      %713 = vperm.xlu0 %712, %v231
      %v714 = vpop.permute.xlu0 %713
      %716 = vset.pattern.permute.xlu0 5
      %717 = vperm.xlu0 %716, %v232
      %v718 = vpop.permute.xlu0 %717
      %720 = vset.pattern.permute.xlu0 5
      %721 = vperm.xlu0 %720, %v233
      %v722 = vpop.permute.xlu0 %721
      %724 = vset.pattern.permute.xlu0 5
      %725 = vperm.xlu0 %724, %v234
      %v726 = vpop.permute.xlu0 %725
      %728 = vset.pattern.permute.xlu0 5
      %729 = vperm.xlu0 %728, %v235
      %v730 = vpop.permute.xlu0 %729
      %732 = vset.pattern.permute.xlu0 5
      %733 = vperm.xlu0 %732, %v236
      %v734 = vpop.permute.xlu0 %733
      %736 = vset.pattern.permute.xlu0 5
      %737 = vperm.xlu0 %736, %v237
      %v738 = vpop.permute.xlu0 %737
      %v740 = vlaneseq
      %v741 = vshrl.u32 %v740, 7
      %v742 = vsub.s32 0, %v741
      %v743 = vrot.slane %v683, %v742
      %v744 = vmul.f32 %v686, %v743
      %v745 = vmul.f32 %v690, %v743
      %v746 = vmul.f32 %v694, %v743
      %v747 = vmul.f32 %v698, %v743
      %v748 = vmul.f32 %v702, %v743
      %v749 = vmul.f32 %v706, %v743
      %v750 = vmul.f32 %v710, %v743
      %v751 = vmul.f32 %v714, %v743
      %v752 = vmul.f32 %v718, %v743
      %v753 = vmul.f32 %v722, %v743
      %v754 = vmul.f32 %v726, %v743
      %v755 = vmul.f32 %v730, %v743
      %v756 = vmul.f32 %v734, %v743
      %v757 = vmul.f32 %v738, %v743
      %v758 = vadd.f32 %v669, %v744
      %v759 = vadd.f32 %v670, %v745
      %v760 = vadd.f32 %v671, %v746
      %v761 = vadd.f32 %v672, %v747
      %v762 = vadd.f32 %v673, %v748
      %v763 = vadd.f32 %v674, %v749
      %v764 = vadd.f32 %v675, %v750
      %v765 = vadd.f32 %v676, %v751
      %v766 = vadd.f32 %v677, %v752
      %v767 = vadd.f32 %v678, %v753
      %v768 = vadd.f32 %v679, %v754
      %v769 = vadd.f32 %v680, %v755
      %v770 = vadd.f32 %v681, %v756
      %v771 = vadd.f32 %v682, %v757
      %v772 = vld [vmem:[%s1 + $0x6] sm:$0x1]
      %773 = vset.pattern.permute.xlu0 6
      %774 = vperm.xlu0 %773, %v224
      %v775 = vpop.permute.xlu0 %774
      %777 = vset.pattern.permute.xlu0 6
      %778 = vperm.xlu0 %777, %v225
      %v779 = vpop.permute.xlu0 %778
      %781 = vset.pattern.permute.xlu0 6
      %782 = vperm.xlu0 %781, %v226
      %v783 = vpop.permute.xlu0 %782
      %785 = vset.pattern.permute.xlu0 6
      %786 = vperm.xlu0 %785, %v227
      %v787 = vpop.permute.xlu0 %786
      %789 = vset.pattern.permute.xlu0 6
      %790 = vperm.xlu0 %789, %v228
      %v791 = vpop.permute.xlu0 %790
      %793 = vset.pattern.permute.xlu0 6
      %794 = vperm.xlu0 %793, %v229
      %v795 = vpop.permute.xlu0 %794
      %797 = vset.pattern.permute.xlu0 6
      %798 = vperm.xlu0 %797, %v230
      %v799 = vpop.permute.xlu0 %798
      %801 = vset.pattern.permute.xlu0 6
      %802 = vperm.xlu0 %801, %v231
      %v803 = vpop.permute.xlu0 %802
      %805 = vset.pattern.permute.xlu0 6
      %806 = vperm.xlu0 %805, %v232
      %v807 = vpop.permute.xlu0 %806
      %809 = vset.pattern.permute.xlu0 6
      %810 = vperm.xlu0 %809, %v233
      %v811 = vpop.permute.xlu0 %810
      %813 = vset.pattern.permute.xlu0 6
      %814 = vperm.xlu0 %813, %v234
      %v815 = vpop.permute.xlu0 %814
      %817 = vset.pattern.permute.xlu0 6
      %818 = vperm.xlu0 %817, %v235
      %v819 = vpop.permute.xlu0 %818
      %821 = vset.pattern.permute.xlu0 6
      %822 = vperm.xlu0 %821, %v236
      %v823 = vpop.permute.xlu0 %822
      %825 = vset.pattern.permute.xlu0 6
      %826 = vperm.xlu0 %825, %v237
      %v827 = vpop.permute.xlu0 %826
      %v829 = vlaneseq
      %v830 = vshrl.u32 %v829, 7
      %v831 = vsub.s32 0, %v830
      %v832 = vrot.slane %v772, %v831
      %v833 = vmul.f32 %v775, %v832
      %v834 = vmul.f32 %v779, %v832
      %v835 = vmul.f32 %v783, %v832
      %v836 = vmul.f32 %v787, %v832
      %v837 = vmul.f32 %v791, %v832
      %v838 = vmul.f32 %v795, %v832
      %v839 = vmul.f32 %v799, %v832
      %v840 = vmul.f32 %v803, %v832
      %v841 = vmul.f32 %v807, %v832
      %v842 = vmul.f32 %v811, %v832
      %v843 = vmul.f32 %v815, %v832
      %v844 = vmul.f32 %v819, %v832
      %v845 = vmul.f32 %v823, %v832
      %v846 = vmul.f32 %v827, %v832
      %v847 = vadd.f32 %v758, %v833
      %v848 = vadd.f32 %v759, %v834
      %v849 = vadd.f32 %v760, %v835
      %v850 = vadd.f32 %v761, %v836
      %v851 = vadd.f32 %v762, %v837
      %v852 = vadd.f32 %v763, %v838
      %v853 = vadd.f32 %v764, %v839
      %v854 = vadd.f32 %v765, %v840
      %v855 = vadd.f32 %v766, %v841
      %v856 = vadd.f32 %v767, %v842
      %v857 = vadd.f32 %v768, %v843
      %v858 = vadd.f32 %v769, %v844
      %v859 = vadd.f32 %v770, %v845
      %v860 = vadd.f32 %v771, %v846
      %v861 = vld [vmem:[%s1 + $0x7] sm:$0x1]
      %862 = vset.pattern.permute.xlu0 7
      %863 = vperm.xlu0 %862, %v224
      %v864 = vpop.permute.xlu0 %863
      %866 = vset.pattern.permute.xlu0 7
      %867 = vperm.xlu0 %866, %v225
      %v868 = vpop.permute.xlu0 %867
      %870 = vset.pattern.permute.xlu0 7
      %871 = vperm.xlu0 %870, %v226
      %v872 = vpop.permute.xlu0 %871
      %874 = vset.pattern.permute.xlu0 7
      %875 = vperm.xlu0 %874, %v227
      %v876 = vpop.permute.xlu0 %875
      %878 = vset.pattern.permute.xlu0 7
      %879 = vperm.xlu0 %878, %v228
      %v880 = vpop.permute.xlu0 %879
      %882 = vset.pattern.permute.xlu0 7
      %883 = vperm.xlu0 %882, %v229
      %v884 = vpop.permute.xlu0 %883
      %886 = vset.pattern.permute.xlu0 7
      %887 = vperm.xlu0 %886, %v230
      %v888 = vpop.permute.xlu0 %887
      %890 = vset.pattern.permute.xlu0 7
      %891 = vperm.xlu0 %890, %v231
      %v892 = vpop.permute.xlu0 %891
      %894 = vset.pattern.permute.xlu0 7
      %895 = vperm.xlu0 %894, %v232
      %v896 = vpop.permute.xlu0 %895
      %898 = vset.pattern.permute.xlu0 7
      %899 = vperm.xlu0 %898, %v233
      %v900 = vpop.permute.xlu0 %899
      %902 = vset.pattern.permute.xlu0 7
      %903 = vperm.xlu0 %902, %v234
      %v904 = vpop.permute.xlu0 %903
      %906 = vset.pattern.permute.xlu0 7
      %907 = vperm.xlu0 %906, %v235
      %v908 = vpop.permute.xlu0 %907
      %910 = vset.pattern.permute.xlu0 7
      %911 = vperm.xlu0 %910, %v236
      %v912 = vpop.permute.xlu0 %911
      %914 = vset.pattern.permute.xlu0 7
      %915 = vperm.xlu0 %914, %v237
      %v916 = vpop.permute.xlu0 %915
      %v918 = vlaneseq
      %v919 = vshrl.u32 %v918, 7
      %v920 = vsub.s32 0, %v919
      %v921 = vrot.slane %v861, %v920
      %v922 = vmul.f32 %v864, %v921
      %v923 = vmul.f32 %v868, %v921
      %v924 = vmul.f32 %v872, %v921
      %v925 = vmul.f32 %v876, %v921
      %v926 = vmul.f32 %v880, %v921
      %v927 = vmul.f32 %v884, %v921
      %v928 = vmul.f32 %v888, %v921
      %v929 = vmul.f32 %v892, %v921
      %v930 = vmul.f32 %v896, %v921
      %v931 = vmul.f32 %v900, %v921
      %v932 = vmul.f32 %v904, %v921
      %v933 = vmul.f32 %v908, %v921
      %v934 = vmul.f32 %v912, %v921
      %v935 = vmul.f32 %v916, %v921
      %v936 = vadd.f32 %v847, %v922
      %v937 = vadd.f32 %v848, %v923
      %v938 = vadd.f32 %v849, %v924
      %v939 = vadd.f32 %v850, %v925
      %v940 = vadd.f32 %v851, %v926
      %v941 = vadd.f32 %v852, %v927
      %v942 = vadd.f32 %v853, %v928
      %v943 = vadd.f32 %v854, %v929
      %v944 = vadd.f32 %v855, %v930
      %v945 = vadd.f32 %v856, %v931
      %v946 = vadd.f32 %v857, %v932
      %v947 = vadd.f32 %v858, %v933
      %v948 = vadd.f32 %v859, %v934
      %v949 = vadd.f32 %v860, %v935
      %v950 = vld [vmem:[%s1 + $0x8] sm:$0x1]
      %951 = vset.pattern.permute.xlu0 8
      %952 = vperm.xlu0 %951, %v224
      %v953 = vpop.permute.xlu0 %952
      %955 = vset.pattern.permute.xlu0 8
      %956 = vperm.xlu0 %955, %v225
      %v957 = vpop.permute.xlu0 %956
      %959 = vset.pattern.permute.xlu0 8
      %960 = vperm.xlu0 %959, %v226
      %v961 = vpop.permute.xlu0 %960
      %963 = vset.pattern.permute.xlu0 8
      %964 = vperm.xlu0 %963, %v227
      %v965 = vpop.permute.xlu0 %964
      %967 = vset.pattern.permute.xlu0 8
      %968 = vperm.xlu0 %967, %v228
      %v969 = vpop.permute.xlu0 %968
      %971 = vset.pattern.permute.xlu0 8
      %972 = vperm.xlu0 %971, %v229
      %v973 = vpop.permute.xlu0 %972
      %975 = vset.pattern.permute.xlu0 8
      %976 = vperm.xlu0 %975, %v230
      %v977 = vpop.permute.xlu0 %976
      %979 = vset.pattern.permute.xlu0 8
      %980 = vperm.xlu0 %979, %v231
      %v981 = vpop.permute.xlu0 %980
      %983 = vset.pattern.permute.xlu0 8
      %984 = vperm.xlu0 %983, %v232
      %v985 = vpop.permute.xlu0 %984
      %987 = vset.pattern.permute.xlu0 8
      %988 = vperm.xlu0 %987, %v233
      %v989 = vpop.permute.xlu0 %988
      %991 = vset.pattern.permute.xlu0 8
      %992 = vperm.xlu0 %991, %v234
      %v993 = vpop.permute.xlu0 %992
      %995 = vset.pattern.permute.xlu0 8
      %996 = vperm.xlu0 %995, %v235
      %v997 = vpop.permute.xlu0 %996
      %999 = vset.pattern.permute.xlu0 8
      %1000 = vperm.xlu0 %999, %v236
      %v1001 = vpop.permute.xlu0 %1000
      %1003 = vset.pattern.permute.xlu0 8
      %1004 = vperm.xlu0 %1003, %v237
      %v1005 = vpop.permute.xlu0 %1004
      %v1007 = vlaneseq
      %v1008 = vshrl.u32 %v1007, 7
      %v1009 = vsub.s32 0, %v1008
      %v1010 = vrot.slane %v950, %v1009
      %v1011 = vmul.f32 %v953, %v1010
      %v1012 = vmul.f32 %v957, %v1010
      %v1013 = vmul.f32 %v961, %v1010
      %v1014 = vmul.f32 %v965, %v1010
      %v1015 = vmul.f32 %v969, %v1010
      %v1016 = vmul.f32 %v973, %v1010
      %v1017 = vmul.f32 %v977, %v1010
      %v1018 = vmul.f32 %v981, %v1010
      %v1019 = vmul.f32 %v985, %v1010
      %v1020 = vmul.f32 %v989, %v1010
      %v1021 = vmul.f32 %v993, %v1010
      %v1022 = vmul.f32 %v997, %v1010
      %v1023 = vmul.f32 %v1001, %v1010
      %v1024 = vmul.f32 %v1005, %v1010
      %v1025 = vadd.f32 %v936, %v1011
      %v1026 = vadd.f32 %v937, %v1012
      %v1027 = vadd.f32 %v938, %v1013
      %v1028 = vadd.f32 %v939, %v1014
      %v1029 = vadd.f32 %v940, %v1015
      %v1030 = vadd.f32 %v941, %v1016
      %v1031 = vadd.f32 %v942, %v1017
      %v1032 = vadd.f32 %v943, %v1018
      %v1033 = vadd.f32 %v944, %v1019
      %v1034 = vadd.f32 %v945, %v1020
      %v1035 = vadd.f32 %v946, %v1021
      %v1036 = vadd.f32 %v947, %v1022
      %v1037 = vadd.f32 %v948, %v1023
      %v1038 = vadd.f32 %v949, %v1024
      %v1039 = vld [vmem:[%s2] sm:$0x1]
      %v1041 = vlaneseq
      %v1042 = vshrl.u32 %v1041, 7
      %v1043 = vsub.s32 0, %v1042
      %v1044 = vrot.slane %v1039, %v1043
      %v1046 = vadd.f32 %v1025, %v1044
      %v1047 = vadd.f32 %v1026, %v1044
      %v1048 = vadd.f32 %v1027, %v1044
      %v1049 = vadd.f32 %v1028, %v1044
      %v1050 = vadd.f32 %v1029, %v1044
      %v1051 = vadd.f32 %v1030, %v1044
      %v1052 = vadd.f32 %v1031, %v1044
      %v1053 = vadd.f32 %v1032, %v1044
      %v1054 = vadd.f32 %v1033, %v1044
      %v1055 = vadd.f32 %v1034, %v1044
      %v1056 = vadd.f32 %v1035, %v1044
      %v1057 = vadd.f32 %v1036, %v1044
      %v1058 = vadd.f32 %v1037, %v1044
      %v1059 = vadd.f32 %v1038, %v1044
      %v1060 = vmax.f32 %v1046, 0.0
      %v1061 = vmax.f32 %v1047, 0.0
      %v1062 = vmax.f32 %v1048, 0.0
      %v1063 = vmax.f32 %v1049, 0.0
      %v1064 = vmax.f32 %v1050, 0.0
      %v1065 = vmax.f32 %v1051, 0.0
      %v1066 = vmax.f32 %v1052, 0.0
      %v1067 = vmax.f32 %v1053, 0.0
      %v1068 = vmax.f32 %v1054, 0.0
      %v1069 = vmax.f32 %v1055, 0.0
      %v1070 = vmax.f32 %v1056, 0.0
      %v1071 = vmax.f32 %v1057, 0.0
      %v1072 = vmax.f32 %v1058, 0.0
      %v1073 = vmax.f32 %v1059, 0.0
      %v1074 = vpack.c.bf16 %v1060, %v1060
      %v1075 = vpack.c.bf16 %v1061, %v1061
      %v1076 = vpack.c.bf16 %v1062, %v1062
      %v1077 = vpack.c.bf16 %v1063, %v1063
      %v1078 = vpack.c.bf16 %v1064, %v1064
      %v1079 = vpack.c.bf16 %v1065, %v1065
      %v1080 = vpack.c.bf16 %v1066, %v1066
      %v1081 = vpack.c.bf16 %v1067, %v1067
      %v1082 = vpack.c.bf16 %v1068, %v1068
      %v1083 = vpack.c.bf16 %v1069, %v1069
      %v1084 = vpack.c.bf16 %v1070, %v1070
      %v1085 = vpack.c.bf16 %v1071, %v1071
      %v1086 = vpack.c.bf16 %v1072, %v1072
      %v1087 = vpack.c.bf16 %v1073, %v1073
      %vm1088 = vcmask 256000
      %1089 = vst.msk [vmem:[%s208] sm:$0x7] %vm1088, %v1074
      %1090 = vst.msk [vmem:[%s208 + $0x4] sm:$0x7] %vm1088, %v1075
      %1091 = vst.msk [vmem:[%s208 + $0x8] sm:$0x7] %vm1088, %v1076
      %1092 = vst.msk [vmem:[%s208 + $0xc] sm:$0x7] %vm1088, %v1077
      %1093 = vst.msk [vmem:[%s208 + $0x10] sm:$0x7] %vm1088, %v1078
      %1094 = vst.msk [vmem:[%s208 + $0x14] sm:$0x7] %vm1088, %v1079
      %1095 = vst.msk [vmem:[%s208 + $0x18] sm:$0x7] %vm1088, %v1080
      %1096 = vst.msk [vmem:[%s208 + $0x1c] sm:$0x7] %vm1088, %v1081
      %1097 = vst.msk [vmem:[%s208 + $0x20] sm:$0x7] %vm1088, %v1082
      %1098 = vst.msk [vmem:[%s208 + $0x24] sm:$0x7] %vm1088, %v1083
      %1099 = vst.msk [vmem:[%s208 + $0x28] sm:$0x7] %vm1088, %v1084
      %1100 = vst.msk [vmem:[%s208 + $0x2c] sm:$0x7] %vm1088, %v1085
      %1101 = vst.msk [vmem:[%s208 + $0x30] sm:$0x7] %vm1088, %v1086
      %1102 = vst.msk [vmem:[%s208 + $0x34] sm:$0x7] %vm1088, %v1087
      %s1103 = smul.u32 14, %s19
      %p1104 = scmp.lt.s32.totalorder %s18, 1
      %s1105 = scalar_select %p1104, %s18, 1
      %p1106 = scmp.lt.s32.totalorder %s1103, 13
      %s1107 = scalar_select %p1106, %s1103, 13
      %s1108 = smul.addr %s1105, 14
      %s1109 = sadd.s32 %s1107, %s1108
      %s1110 = smul.addr %s1109, 4
      %s1111 = scalar_lea.vmem %s3, %s1110
      // Predicated region
      $region33: #{tpu_custom_call.1} parent=31 // pred_check
        %p1112 = pneg %p116
      $region34: #{tpu_custom_call.1} parent=31 // pred_check_branch
        %1114 = sbr.rel (%p1112) target = $region36
      $region35: #{tpu_custom_call.1} parent=31 // pred_region
        %s1115 = smul.u32 14, %s19
      $region36: #{tpu_custom_call.1} parent=31 // pred_fallthru
        _
    $region32: #{tpu_custom_call.1} parent=5 // pred_fallthru
      _
    %p1116 = scmp.le.s32.totalorder 2, %s9
    // Predicated region
    $region37: #{tpu_custom_call.1} parent=5 // pred_check
      %p1117 = pneg %p1116
    $region38: #{tpu_custom_call.1} parent=5 // pred_check_branch
      %1119 = sbr.rel (%p1117) target = $region40
    $region39: #{tpu_custom_call.1} parent=5 // pred_region
      %s1120 = ssub.s32 %s9, 2
      // Predicated region
      $region41: #{tpu_custom_call.1} parent=39 // pred_check
        %p1121 = pneg %p122
      $region42: #{tpu_custom_call.1} parent=39 // pred_check_branch
        %1123 = sbr.rel (%p1121) target = $region44
      $region43: #{tpu_custom_call.1} parent=39 // pred_region
        %s1124 = smul.u32 14, %s21
        %p1125 = scmp.lt.s32.totalorder %s20, 1
        %s1126 = scalar_select %p1125, %s20, 1
        %p1127 = scmp.lt.s32.totalorder %s1124, 13
        %s1128 = scalar_select %p1127, %s1124, 13
        %s1129 = smul.addr %s1126, 14
        %s1130 = sadd.s32 %s1128, %s1129
        %s1131 = smul.addr %s1130, 4
        %s1132 = scalar_lea.vmem %s3, %s1131
      $region44: #{tpu_custom_call.1} parent=39 // pred_fallthru
        _
    $region40: #{tpu_custom_call.1} parent=5 // pred_fallthru
      _
  $region6: #{tpu_custom_call.1} parent=0 // loop_footer
    %s13 = sadd.s32 1, %s9
  $region7: #{tpu_custom_call.1} parent=0 // loop_footer_branch
    %8 = sbr.rel target = $region3
  $region8: #{tpu_custom_call.1} parent=0 // loop_exit
    _

</llo_original>
